<compile_context>
chip_gen: v7x
topology: tpu7x:2x2x1
jax: 0.10.0
libtpu: 0.0.40
codegen_flags: <defaults>
</compile_context>

<pallas_src>
import functools

import jax
import jax.numpy as jnp
from jax.experimental import pallas as pl
from jax.experimental.pallas import tpu as pltpu

HIDDEN = 128
F_HALF = 64          # per-stream feature width (g_vec / a_vec)
OUT_PAD = 256        # fc2 output (146) zero-padded to a multiple of 128 lanes


def _mlp_kernel(g_ref, a_ref, w1g_ref, w1a_ref, b1_ref, w2_ref, b2_ref, o_ref):
    # Fused concat:  cat(g, a) @ W1  ==  g @ W1[:64] + a @ W1[64:]
    h = jnp.dot(g_ref[...], w1g_ref[...], preferred_element_type=jnp.float32)
    h = h + jnp.dot(a_ref[...], w1a_ref[...], preferred_element_type=jnp.float32)
    h = jnp.maximum(h + b1_ref[...], 0.0)                      # bias + ReLU (f32)
    y = jnp.dot(h.astype(w2_ref.dtype), w2_ref[...],
                preferred_element_type=jnp.float32)
    o_ref[...] = (y + b2_ref[...]).astype(o_ref.dtype)         # lane-dense (tm, 256)


def _round_up(x, m):
    return ((x + m - 1) // m) * m


def combine_mlp_pallas(g2d, a2d, w1, b1, w2, b2, *, tile_m=1024):
    """g2d, a2d: (M, 64) f32. Returns (M, OUT) f32 = fc2(relu(fc1(cat(g,a))))."""
    M = g2d.shape[0]
    OUT = w2.shape[1]

    # Row tile: multiple of 8 sublanes, at most tile_m; pad rows with zeros so
    # the grid is exact (padded rows are sliced away afterwards).
    tm = min(tile_m, _round_up(M, 8))
    m_pad = _round_up(M, tm)
    if m_pad != M:
        pad = ((0, m_pad - M), (0, 0))
        g2d = jnp.pad(g2d, pad)
        a2d = jnp.pad(a2d, pad)

    # bf16 MXU operands, f32 accumulation / biases / output.
    g_bf = g2d.astype(jnp.bfloat16)
    a_bf = a2d.astype(jnp.bfloat16)
    w1g = w1[:F_HALF].astype(jnp.bfloat16)                     # (64, 128)
    w1a = w1[F_HALF:].astype(jnp.bfloat16)                     # (64, 128)
    b1r = b1.reshape(1, HIDDEN).astype(jnp.float32)            # (1, 128)
    w2p = jnp.zeros((HIDDEN, OUT_PAD), jnp.bfloat16)
    w2p = w2p.at[:, :OUT].set(w2.astype(jnp.bfloat16))         # (128, 256)
    b2p = jnp.zeros((1, OUT_PAD), jnp.float32)
    b2p = b2p.at[:, :OUT].set(b2.astype(jnp.float32))          # (1, 256)

    grid = (m_pad // tm,)
    y_pad = pl.pallas_call(
        _mlp_kernel,
        out_shape=jax.ShapeDtypeStruct((m_pad, OUT_PAD), jnp.float32),
        grid_spec=pltpu.PrefetchScalarGridSpec(
            num_scalar_prefetch=0,
            grid=grid,
            in_specs=[
                pl.BlockSpec((tm, F_HALF), lambda i: (i, 0)),          # g rows
                pl.BlockSpec((tm, F_HALF), lambda i: (i, 0)),          # a rows
                pl.BlockSpec((F_HALF, HIDDEN), lambda i: (0, 0)),      # W1[:64]
                pl.BlockSpec((F_HALF, HIDDEN), lambda i: (0, 0)),      # W1[64:]
                pl.BlockSpec((1, HIDDEN), lambda i: (0, 0)),           # b1
                pl.BlockSpec((HIDDEN, OUT_PAD), lambda i: (0, 0)),     # W2 (padded)
                pl.BlockSpec((1, OUT_PAD), lambda i: (0, 0)),          # b2 (padded)
            ],
            out_specs=pl.BlockSpec((tm, OUT_PAD), lambda i: (i, 0)),
        ),
        compiler_params=pltpu.CompilerParams(
            dimension_semantics=("parallel",)),                 # shards row tiles across TCs (v7x)
    )(g_bf, a_bf, w1g, w1a, b1r, w2p, b2p)

    return y_pad[:M, :OUT]


def _normalize(v, eps=1e-12):
    # matches torch.nn.functional.normalize(dim=-1): v / max(||v||, eps)
    n = jnp.sqrt(jnp.sum(v * v, axis=-1, keepdims=True))
    return v / jnp.maximum(n, eps)


@functools.partial(jax.jit, static_argnums=(3, 4, 5))
def combine_module_forward(g_vec, a_vec, params, batch_size, length_size,
                           joint_size=22):
    """Reproduces CombineModule.forward.

    g_vec: (B, L, 64) float32
    a_vec: (B, L, 64) float32
    Returns: q (B, L, J, 3, 3), t (B, L, 3), b (B, L, 10), g (B, L, 1)
    """
    B, L, J = batch_size, length_size, joint_size
    w1, b1, w2, b2 = params
    OUT = w2.shape[1]

    # --- Pallas hot path: fused concat + fc1 -> relu -> fc2 ---
    g2d = g_vec.reshape(B * L, F_HALF)
    a2d = a_vec.reshape(B * L, F_HALF)
    y2d = combine_mlp_pallas(g2d, a2d, w1, b1, w2, b2)
    y = y2d.reshape(B, L, OUT)                                  # (B, L, 146)

    # --- glue: 6D rotation -> rotation matrix (Gram-Schmidt) ---
    q6 = y[:, :, : J * 6].reshape(B * L * J, 6)
    tmp_x = _normalize(q6[:, :3])
    tmp_z = _normalize(jnp.cross(tmp_x, q6[:, 3:]))
    tmp_y = jnp.cross(tmp_z, tmp_x)
    q = jnp.stack((tmp_x, tmp_y, tmp_z), axis=-1)               # columns x, y, z
    q = q.reshape(B, L, J, 3, 3)

    t = y[:, :, J * 6: J * 6 + 3]
    b = y[:, :, J * 6 + 3: J * 6 + 3 + 10]
    g = y[:, :, J * 6 + 3 + 10:]
    return q, t, b, g


def init_params(key, joint_size=22):
    out_dim = joint_size * 6 + 3 + 10 + 1                       # 146
    k1, k2, k3, k4 = jax.random.split(key, 4)
    w1 = jax.random.normal(k1, (128, 128), jnp.float32) * 0.05
    b1 = jax.random.normal(k2, (128,), jnp.float32) * 0.05
    w2 = jax.random.normal(k3, (128, out_dim), jnp.float32) * 0.05
    b2 = jax.random.normal(k4, (out_dim,), jnp.float32) * 0.05
    return w1, b1, w2, b2


def _mlp_ref(g_vec, a_vec, params):
    """Pure-JAX f32 reference of the MLP part (for a loose correctness check)."""
    w1, b1, w2, b2 = params
    x = jnp.concatenate((g_vec, a_vec), axis=-1)
    h = jnp.maximum(jnp.dot(x, w1) + b1, 0.0)
    return jnp.dot(h, w2) + b2


if __name__ == "__main__":
    B, L, J = 2, 8, 22
    key = jax.random.PRNGKey(0)
    kg, ka, kp = jax.random.split(key, 3)
    g_vec = jax.random.normal(kg, (B, L, F_HALF), jnp.float32)
    a_vec = jax.random.normal(ka, (B, L, F_HALF), jnp.float32)
    params = init_params(kp, joint_size=J)

    q, t, b, g = combine_module_forward(g_vec, a_vec, params, B, L, J)
    jax.block_until_ready((q, t, b, g))

    assert q.shape == (B, L, J, 3, 3)
    assert t.shape == (B, L, 3)
    assert b.shape == (B, L, 10)
    assert g.shape == (B, L, 1)

    # Loose tolerance: kernel uses bf16 MXU operands with f32 accumulation.
    y_ref = _mlp_ref(g_vec, a_vec, params)
    t_ref = y_ref[:, :, J * 6: J * 6 + 3]
    b_ref = y_ref[:, :, J * 6 + 3: J * 6 + 3 + 10]
    g_ref = y_ref[:, :, J * 6 + 3 + 10:]
    assert jnp.allclose(t, t_ref, atol=5e-2, rtol=5e-2)
    assert jnp.allclose(b, b_ref, atol=5e-2, rtol=5e-2)
    assert jnp.allclose(g, g_ref, atol=5e-2, rtol=5e-2)
    assert bool(jnp.all(jnp.isfinite(q)))

    print("KERNEL_OK")
</pallas_src>

<mosaic_0001>
module attributes {stable_mosaic.version = 11 : i64} {
  func.func @_mlp_kernel(%arg0: i32, %arg1: memref<16x64xbf16, #tpu.memory_space<vmem>>, %arg2: memref<16x64xbf16, #tpu.memory_space<vmem>>, %arg3: memref<64x128xbf16, #tpu.memory_space<vmem>>, %arg4: memref<64x128xbf16, #tpu.memory_space<vmem>>, %arg5: memref<1x128xf32, #tpu.memory_space<vmem>>, %arg6: memref<128x256xbf16, #tpu.memory_space<vmem>>, %arg7: memref<1x256xf32, #tpu.memory_space<vmem>>, %arg8: memref<16x256xf32, #tpu.memory_space<vmem>>) attributes {dimension_semantics = [#tpu.dimension_semantics<parallel>], iteration_bounds = array<i64: 1>, scalar_prefetch = 0 : i64, scratch_operands = 0 : i64, tpu.core_type = #tpu.core_type<tc>, window_params = [{transform_indices = @transform_0, window_bounds = array<i64: 16, 64>}, {transform_indices = @transform_1, window_bounds = array<i64: 16, 64>}, {pipeline_mode = #tpu.pipeline_mode<synchronous>, transform_indices = @transform_2, window_bounds = array<i64: 64, 128>}, {pipeline_mode = #tpu.pipeline_mode<synchronous>, transform_indices = @transform_3, window_bounds = array<i64: 64, 128>}, {pipeline_mode = #tpu.pipeline_mode<synchronous>, transform_indices = @transform_4, window_bounds = array<i64: 1, 128>}, {pipeline_mode = #tpu.pipeline_mode<synchronous>, transform_indices = @transform_5, window_bounds = array<i64: 128, 256>}, {pipeline_mode = #tpu.pipeline_mode<synchronous>, transform_indices = @transform_6, window_bounds = array<i64: 1, 256>}, {transform_indices = @transform_7, window_bounds = array<i64: 16, 256>}]} {
    %c0 = arith.constant 0 : index
    %c0_0 = arith.constant 0 : index
    %0 = vector.load %arg1[%c0, %c0_0] : memref<16x64xbf16, #tpu.memory_space<vmem>>, vector<16x64xbf16>
    %c0_1 = arith.constant 0 : index
    %c0_2 = arith.constant 0 : index
    %1 = vector.load %arg3[%c0_1, %c0_2] : memref<64x128xbf16, #tpu.memory_space<vmem>>, vector<64x128xbf16>
    %cst = arith.constant dense<0.000000e+00> : vector<16x128xf32>
    %2 = tpu.matmul %0, %1, %cst {dimension_numbers = #tpu.dot_dimension_numbers<[1], [0], [0], [1], [0, 0, 1, 1], [], []>} : vector<16x64xbf16>, vector<64x128xbf16>, vector<16x128xf32> -> vector<16x128xf32>
    %c0_3 = arith.constant 0 : index
    %c0_4 = arith.constant 0 : index
    %3 = vector.load %arg2[%c0_3, %c0_4] : memref<16x64xbf16, #tpu.memory_space<vmem>>, vector<16x64xbf16>
    %c0_5 = arith.constant 0 : index
    %c0_6 = arith.constant 0 : index
    %4 = vector.load %arg4[%c0_5, %c0_6] : memref<64x128xbf16, #tpu.memory_space<vmem>>, vector<64x128xbf16>
    %cst_7 = arith.constant dense<0.000000e+00> : vector<16x128xf32>
    %5 = tpu.matmul %3, %4, %cst_7 {dimension_numbers = #tpu.dot_dimension_numbers<[1], [0], [0], [1], [0, 0, 1, 1], [], []>} : vector<16x64xbf16>, vector<64x128xbf16>, vector<16x128xf32> -> vector<16x128xf32>
    %6 = arith.addf %2, %5 : vector<16x128xf32>
    %c0_8 = arith.constant 0 : index
    %c0_9 = arith.constant 0 : index
    %7 = vector.load %arg5[%c0_8, %c0_9] : memref<1x128xf32, #tpu.memory_space<vmem>>, vector<1x128xf32>
    %8 = vector.broadcast %7 : vector<1x128xf32> to vector<16x128xf32>
    %9 = arith.addf %6, %8 : vector<16x128xf32>
    %cst_10 = arith.constant 0.000000e+00 : f32
    %10 = vector.broadcast %cst_10 : f32 to vector<16x128xf32>
    %11 = arith.maximumf %9, %10 : vector<16x128xf32>
    %12 = arith.truncf %11 : vector<16x128xf32> to vector<16x128xbf16>
    %c0_11 = arith.constant 0 : index
    %c0_12 = arith.constant 0 : index
    %13 = vector.load %arg6[%c0_11, %c0_12] : memref<128x256xbf16, #tpu.memory_space<vmem>>, vector<128x256xbf16>
    %cst_13 = arith.constant dense<0.000000e+00> : vector<16x256xf32>
    %14 = tpu.matmul %12, %13, %cst_13 {dimension_numbers = #tpu.dot_dimension_numbers<[1], [0], [0], [1], [0, 0, 1, 1], [], []>} : vector<16x128xbf16>, vector<128x256xbf16>, vector<16x256xf32> -> vector<16x256xf32>
    %c0_14 = arith.constant 0 : index
    %c0_15 = arith.constant 0 : index
    %15 = vector.load %arg7[%c0_14, %c0_15] : memref<1x256xf32, #tpu.memory_space<vmem>>, vector<1x256xf32>
    %16 = vector.broadcast %15 : vector<1x256xf32> to vector<16x256xf32>
    %17 = arith.addf %14, %16 : vector<16x256xf32>
    %c0_16 = arith.constant 0 : index
    %c0_17 = arith.constant 0 : index
    %18 = vector.load %arg8[%c0_16, %c0_17] : memref<16x256xf32, #tpu.memory_space<vmem>>, vector<16x256xf32>
    tpu.vector_store %arg8[%c0_16, %c0_17], %17 {strides = array<i32>} : memref<16x256xf32, #tpu.memory_space<vmem>>, vector<16x256xf32>,
    return
  }
  func.func @transform_0(%arg0: i32) -> (i32, i32) {
    %c0_i32 = arith.constant 0 : i32
    %c0_i32_0 = arith.constant 0 : i32
    return %arg0, %c0_i32 : i32, i32
  }
  func.func @transform_1(%arg0: i32) -> (i32, i32) {
    %c0_i32 = arith.constant 0 : i32
    %c0_i32_0 = arith.constant 0 : i32
    return %arg0, %c0_i32 : i32, i32
  }
  func.func @transform_2(%arg0: i32) -> (i32, i32) {
    %c0_i32 = arith.constant 0 : i32
    %c0_i32_0 = arith.constant 0 : i32
    %c0_i32_1 = arith.constant 0 : i32
    return %c0_i32, %c0_i32_0 : i32, i32
  }
  func.func @transform_3(%arg0: i32) -> (i32, i32) {
    %c0_i32 = arith.constant 0 : i32
    %c0_i32_0 = arith.constant 0 : i32
    %c0_i32_1 = arith.constant 0 : i32
    return %c0_i32, %c0_i32_0 : i32, i32
  }
  func.func @transform_4(%arg0: i32) -> (i32, i32) {
    %c0_i32 = arith.constant 0 : i32
    %c0_i32_0 = arith.constant 0 : i32
    %c0_i32_1 = arith.constant 0 : i32
    return %c0_i32, %c0_i32_0 : i32, i32
  }
  func.func @transform_5(%arg0: i32) -> (i32, i32) {
    %c0_i32 = arith.constant 0 : i32
    %c0_i32_0 = arith.constant 0 : i32
    %c0_i32_1 = arith.constant 0 : i32
    return %c0_i32, %c0_i32_0 : i32, i32
  }
  func.func @transform_6(%arg0: i32) -> (i32, i32) {
    %c0_i32 = arith.constant 0 : i32
    %c0_i32_0 = arith.constant 0 : i32
    %c0_i32_1 = arith.constant 0 : i32
    return %c0_i32, %c0_i32_0 : i32, i32
  }
  func.func @transform_7(%arg0: i32) -> (i32, i32) {
    %c0_i32 = arith.constant 0 : i32
    %c0_i32_0 = arith.constant 0 : i32
    return %arg0, %c0_i32 : i32, i32
  }
}

</mosaic_0001>

<llo_original>
// kernel: combine_module_forward.1
$region0: #{combine_module_forward.1}
  #allocation0 [shape = 'u32[]', space=smem, size = 0x4, offset = 0x4, fixed_abs, tag = 'smem constant byte address 0x4 - core index']
  #allocation1 [shape = 'u32[144,128]{1,0:T(1,128)}', space=vmem, size = 0x12000, scoped, tag = 'internal scratch']
  %s0 = inlined_call_operand.vmem [shape: bf16[16,64], index: 0, kind: input, shape index: {}]
  %s1 = inlined_call_operand.vmem [shape: bf16[16,64], index: 1, kind: input, shape index: {}]
  %s2 = inlined_call_operand.vmem [shape: bf16[64,128], index: 2, kind: input, shape index: {}]
  %s3 = inlined_call_operand.vmem [shape: bf16[64,128], index: 3, kind: input, shape index: {}]
  %s4 = inlined_call_operand.vmem [shape: f32[1,128], index: 4, kind: input, shape index: {}]
  %s5 = inlined_call_operand.vmem [shape: bf16[128,256], index: 5, kind: input, shape index: {}]
  %s6 = inlined_call_operand.vmem [shape: f32[1,256], index: 6, kind: input, shape index: {}]
  %s7 = inlined_call_operand.vmem [shape: f32[16,256], index: 7, kind: output, shape index: {}]
  %s8 = sld [smem:[#allocation0]]
  $region38: #{combine_module_forward.1} parent=0
    _
  %s10 = ssub.s32 1, %s8
  %s11 = scalar_select 0, %s10, %s8
  // Predicated region
  $region2: #{combine_module_forward.1} parent=0 // pred_check
    _
  $region3: #{combine_module_forward.1} parent=0 // pred_check_branch
    %13 = sbr.rel (0) target = $region5
  $region4: #{combine_module_forward.1} parent=0 // pred_region
    _
  $region5: #{combine_module_forward.1} parent=0 // pred_fallthru
    _
  // Predicated region
  $region6: #{combine_module_forward.1} parent=0 // pred_check
    _
  $region7: #{combine_module_forward.1} parent=0 // pred_check_branch
    %15 = sbr.rel (0) target = $region9
  $region8: #{combine_module_forward.1} parent=0 // pred_region
    _
  $region9: #{combine_module_forward.1} parent=0 // pred_fallthru
    _
  // Predicated region
  $region10: #{combine_module_forward.1} parent=0 // pred_check
    _
  $region11: #{combine_module_forward.1} parent=0 // pred_check_branch
    %17 = sbr.rel (0) target = $region13
  $region12: #{combine_module_forward.1} parent=0 // pred_region
    _
  $region13: #{combine_module_forward.1} parent=0 // pred_fallthru
    _
  // Predicated region
  $region14: #{combine_module_forward.1} parent=0 // pred_check
    _
  $region15: #{combine_module_forward.1} parent=0 // pred_check_branch
    %19 = sbr.rel (0) target = $region17
  $region16: #{combine_module_forward.1} parent=0 // pred_region
    _
  $region17: #{combine_module_forward.1} parent=0 // pred_fallthru
    _
  // Predicated region
  $region18: #{combine_module_forward.1} parent=0 // pred_check
    _
  $region19: #{combine_module_forward.1} parent=0 // pred_check_branch
    %21 = sbr.rel (0) target = $region21
  $region20: #{combine_module_forward.1} parent=0 // pred_region
    _
  $region21: #{combine_module_forward.1} parent=0 // pred_fallthru
    _
  // Predicated region
  $region22: #{combine_module_forward.1} parent=0 // pred_check
    _
  $region23: #{combine_module_forward.1} parent=0 // pred_check_branch
    %23 = sbr.rel (0) target = $region25
  $region24: #{combine_module_forward.1} parent=0 // pred_region
    _
  $region25: #{combine_module_forward.1} parent=0 // pred_fallthru
    _
  // Predicated region
  $region26: #{combine_module_forward.1} parent=0 // pred_check
    _
  $region27: #{combine_module_forward.1} parent=0 // pred_check_branch
    %25 = sbr.rel (0) target = $region29
  $region28: #{combine_module_forward.1} parent=0 // pred_region
    _
  $region29: #{combine_module_forward.1} parent=0 // pred_fallthru
    _
  %v27 = vld [vmem:[%s0] sm:$0xf]
  %v28 = vld [vmem:[%s0 + $0x4] sm:$0xf]
  %v29 = vld [vmem:[%s2] sm:$0xf]
  %v30 = vld [vmem:[%s2 + $0x4] sm:$0xf]
  %v31 = vld [vmem:[%s2 + $0x8] sm:$0xf]
  %v32 = vld [vmem:[%s2 + $0xc] sm:$0xf]
  %v33 = vld [vmem:[%s2 + $0x10] sm:$0xf]
  %v34 = vld [vmem:[%s2 + $0x14] sm:$0xf]
  %v35 = vld [vmem:[%s2 + $0x18] sm:$0xf]
  %v36 = vld [vmem:[%s2 + $0x1c] sm:$0xf]
  %v37 = vld [vmem:[%s1] sm:$0xf]
  %v38 = vld [vmem:[%s1 + $0x4] sm:$0xf]
  %v39 = vld [vmem:[%s3] sm:$0xf]
  %v40 = vld [vmem:[%s3 + $0x4] sm:$0xf]
  %v41 = vld [vmem:[%s3 + $0x8] sm:$0xf]
  %v42 = vld [vmem:[%s3 + $0xc] sm:$0xf]
  %v43 = vld [vmem:[%s3 + $0x10] sm:$0xf]
  %v44 = vld [vmem:[%s3 + $0x14] sm:$0xf]
  %v45 = vld [vmem:[%s3 + $0x18] sm:$0xf]
  %v46 = vld [vmem:[%s3 + $0x1c] sm:$0xf]
  %v49 = vunpack.c.l.b16 %v37
  %v50 = vunpack.c.l.b16 %v38
  %v51 = vpack.c.b16 %v50, %v49
  %v60 = vunpack.c.l.b16 %v39
  %v61 = vunpack.c.l.b16 %v40
  %v62 = vunpack.c.l.b16 %v41
  %v63 = vunpack.c.l.b16 %v42
  %v64 = vunpack.c.l.b16 %v43
  %v65 = vunpack.c.l.b16 %v44
  %v66 = vunpack.c.l.b16 %v45
  %v67 = vunpack.c.l.b16 %v46
  %v68 = vpack.c.b16 %v61, %v60
  %v69 = vpack.c.b16 %v63, %v62
  %v70 = vpack.c.b16 %v65, %v64
  %v71 = vpack.c.b16 %v67, %v66
  %vm76 = vcmask 523264
  %v78 = vsel %vm76, %v51, 0
  %80 = vmatprep.subr.bf16.mxu0 0
  %81 = vmatpush1.bf16.msra.mxu0 %v68
  %82 = vmatprep.subr.bf16.mxu0 0
  %83 = vmatpush1.bf16.msra.mxu0 %v69
  %84 = vmatprep.subr.bf16.mxu0 0
  %85 = vmatpush1.bf16.msra.mxu0 %v70
  %86 = vmatprep.subr.bf16.mxu0 0
  %87 = vmatpush1.bf16.msra.mxu0 %v71
  %88 = vmatprep.subr.bf16.mxu0 0
  %89 = vmatpush1.bf16.msra.mxu0 0
  %90 = vmatprep.subr.bf16.mxu0 0
  %91 = vmatpush1.bf16.msra.mxu0 0
  %92 = vmatprep.subr.bf16.mxu0 0
  %93 = vmatpush1.bf16.msra.mxu0 0
  %94 = vmatprep.subr.bf16.mxu0 0
  %95 = vmatpush1.bf16.msra.mxu0 0
  %96 = vmatprep.subr.bf16.mxu0 0
  %97 = vmatpush1.bf16.msra.mxu0 0
  %98 = vmatprep.subr.bf16.mxu0 0
  %99 = vmatpush1.bf16.msra.mxu0 0
  %100 = vmatprep.subr.bf16.mxu0 0
  %101 = vmatpush1.bf16.msra.mxu0 0
  %102 = vmatprep.subr.bf16.mxu0 0
  %103 = vmatpush1.bf16.msra.mxu0 0
  %104 = vmatprep.subr.bf16.mxu0 0
  %105 = vmatpush1.bf16.msra.mxu0 0
  %106 = vmatprep.subr.bf16.mxu0 0
  %107 = vmatpush1.bf16.msra.mxu0 0
  %108 = vmatprep.subr.bf16.mxu0 0
  %109 = vmatpush1.bf16.msra.mxu0 0
  %110 = vmatprep.subr.bf16.mxu0 0
  %111 = vmatpush1.bf16.msra.mxu0 0
  %112 = vmatprep.mubr.bf16.mxu0 0
  %113 = vmatmul.mubr.bf16.gmra.mrb[0].mxu0 %v78
  %v114 = vpop.f32.mrb[0].mxu0
  %v115 = vadd.f32 0.0, %v114
  %v116 = vpop.f32.mrb[0].mxu0
  %v117 = vpop.f32.mrb[0].mxu0
  %v118 = vadd.f32 0.0, %v117
  %v119 = vpop.f32.mrb[0].mxu0
  %120 = vdwg.mxu0
  %v123 = vunpack.c.l.b16 %v27
  %v124 = vunpack.c.l.b16 %v28
  %v125 = vpack.c.b16 %v124, %v123
  %v134 = vunpack.c.l.b16 %v29
  %v135 = vunpack.c.l.b16 %v30
  %v136 = vunpack.c.l.b16 %v31
  %v137 = vunpack.c.l.b16 %v32
  %v138 = vunpack.c.l.b16 %v33
  %v139 = vunpack.c.l.b16 %v34
  %v140 = vunpack.c.l.b16 %v35
  %v141 = vunpack.c.l.b16 %v36
  %v142 = vpack.c.b16 %v135, %v134
  %v143 = vpack.c.b16 %v137, %v136
  %v144 = vpack.c.b16 %v139, %v138
  %v145 = vpack.c.b16 %v141, %v140
  %v151 = vsel %vm76, %v125, 0
  %153 = vmatprep.subr.bf16.mxu0 0
  %154 = vmatpush1.bf16.msra.mxu0 %v142
  %155 = vmatprep.subr.bf16.mxu0 0
  %156 = vmatpush1.bf16.msra.mxu0 %v143
  %157 = vmatprep.subr.bf16.mxu0 0
  %158 = vmatpush1.bf16.msra.mxu0 %v144
  %159 = vmatprep.subr.bf16.mxu0 0
  %160 = vmatpush1.bf16.msra.mxu0 %v145
  %161 = vmatprep.subr.bf16.mxu0 0
  %162 = vmatpush1.bf16.msra.mxu0 0
  %163 = vmatprep.subr.bf16.mxu0 0
  %164 = vmatpush1.bf16.msra.mxu0 0
  %165 = vmatprep.subr.bf16.mxu0 0
  %166 = vmatpush1.bf16.msra.mxu0 0
  %167 = vmatprep.subr.bf16.mxu0 0
  %168 = vmatpush1.bf16.msra.mxu0 0
  %169 = vmatprep.subr.bf16.mxu0 0
  %170 = vmatpush1.bf16.msra.mxu0 0
  %171 = vmatprep.subr.bf16.mxu0 0
  %172 = vmatpush1.bf16.msra.mxu0 0
  %173 = vmatprep.subr.bf16.mxu0 0
  %174 = vmatpush1.bf16.msra.mxu0 0
  %175 = vmatprep.subr.bf16.mxu0 0
  %176 = vmatpush1.bf16.msra.mxu0 0
  %177 = vmatprep.subr.bf16.mxu0 0
  %178 = vmatpush1.bf16.msra.mxu0 0
  %179 = vmatprep.subr.bf16.mxu0 0
  %180 = vmatpush1.bf16.msra.mxu0 0
  %181 = vmatprep.subr.bf16.mxu0 0
  %182 = vmatpush1.bf16.msra.mxu0 0
  %183 = vmatprep.subr.bf16.mxu0 0
  %184 = vmatpush1.bf16.msra.mxu0 0
  %185 = vmatprep.mubr.bf16.mxu0 0
  %186 = vmatmul.mubr.bf16.gmra.mrb[0].mxu0 %v151
  %v187 = vpop.f32.mrb[0].mxu0
  %v188 = vadd.f32 %v115, %v187
  %v189 = vpop.f32.mrb[0].mxu0
  %v190 = vpop.f32.mrb[0].mxu0
  %v191 = vadd.f32 %v118, %v190
  %v192 = vpop.f32.mrb[0].mxu0
  %193 = vdwg.mxu0
  %v194 = vld [vmem:[%s4] sm:$0x1]
  %v196 = vlaneseq
  %v197 = vshrl.u32 %v196, 7
  %v198 = vsub.s32 0, %v197
  %v199 = vrot.slane %v194, %v198
  %v201 = vadd.f32 %v188, %v199
  %v202 = vadd.f32 %v191, %v199
  %v203 = vmax.f32 %v201, 0.0
  %v204 = vmax.f32 %v202, 0.0
  %v205 = vpack.c.bf16 %v204, %v203
  %v206 = vld [vmem:[%s5] sm:$0xff]
  %v207 = vld [vmem:[%s5 + $0x8] sm:$0xff]
  %v208 = vld [vmem:[%s5 + $0x10] sm:$0xff]
  %v209 = vld [vmem:[%s5 + $0x18] sm:$0xff]
  %v210 = vld [vmem:[%s5 + $0x20] sm:$0xff]
  %v211 = vld [vmem:[%s5 + $0x28] sm:$0xff]
  %v212 = vld [vmem:[%s5 + $0x30] sm:$0xff]
  %v213 = vld [vmem:[%s5 + $0x38] sm:$0xff]
  %v214 = vld [vmem:[%s5 + $0x40] sm:$0xff]
  %v215 = vld [vmem:[%s5 + $0x48] sm:$0xff]
  %v216 = vld [vmem:[%s5 + $0x50] sm:$0xff]
  %v217 = vld [vmem:[%s5 + $0x58] sm:$0xff]
  %v218 = vld [vmem:[%s5 + $0x60] sm:$0xff]
  %v219 = vld [vmem:[%s5 + $0x68] sm:$0xff]
  %v220 = vld [vmem:[%s5 + $0x70] sm:$0xff]
  %v221 = vld [vmem:[%s5 + $0x78] sm:$0xff]
  %v222 = vld [vmem:[%s6] sm:$0x3]
  %v224 = vlaneseq
  %v225 = vshrl.u32 %v224, 7
  %v226 = vsub.s32 0, %v225
  %v227 = vrot.slane %v222, %v226
  %v228 = vlaneseq
  %v229 = vshrl.u32 %v228, 7
  %v230 = vsub.s32 1, %v229
  %v231 = vrot.slane %v222, %v230
  %v250 = vunpack.c.l.b16 %v206
  %v251 = vunpack.c.h.b16 %v206
  %v252 = vunpack.c.l.b16 %v207
  %v253 = vunpack.c.h.b16 %v207
  %v254 = vunpack.c.l.b16 %v208
  %v255 = vunpack.c.h.b16 %v208
  %v256 = vunpack.c.l.b16 %v209
  %v257 = vunpack.c.h.b16 %v209
  %v258 = vunpack.c.l.b16 %v210
  %v259 = vunpack.c.h.b16 %v210
  %v260 = vunpack.c.l.b16 %v211
  %v261 = vunpack.c.h.b16 %v211
  %v262 = vunpack.c.l.b16 %v212
  %v263 = vunpack.c.h.b16 %v212
  %v264 = vunpack.c.l.b16 %v213
  %v265 = vunpack.c.h.b16 %v213
  %v266 = vunpack.c.l.b16 %v214
  %v267 = vunpack.c.h.b16 %v214
  %v268 = vunpack.c.l.b16 %v215
  %v269 = vunpack.c.h.b16 %v215
  %v270 = vunpack.c.l.b16 %v216
  %v271 = vunpack.c.h.b16 %v216
  %v272 = vunpack.c.l.b16 %v217
  %v273 = vunpack.c.h.b16 %v217
  %v274 = vunpack.c.l.b16 %v218
  %v275 = vunpack.c.h.b16 %v218
  %v276 = vunpack.c.l.b16 %v219
  %v277 = vunpack.c.h.b16 %v219
  %v278 = vunpack.c.l.b16 %v220
  %v279 = vunpack.c.h.b16 %v220
  %v280 = vunpack.c.l.b16 %v221
  %v281 = vunpack.c.h.b16 %v221
  %v282 = vpack.c.b16 %v252, %v250
  %v283 = vpack.c.b16 %v253, %v251
  %v284 = vpack.c.b16 %v256, %v254
  %v285 = vpack.c.b16 %v257, %v255
  %v286 = vpack.c.b16 %v260, %v258
  %v287 = vpack.c.b16 %v261, %v259
  %v288 = vpack.c.b16 %v264, %v262
  %v289 = vpack.c.b16 %v265, %v263
  %v290 = vpack.c.b16 %v268, %v266
  %v291 = vpack.c.b16 %v269, %v267
  %v292 = vpack.c.b16 %v272, %v270
  %v293 = vpack.c.b16 %v273, %v271
  %v294 = vpack.c.b16 %v276, %v274
  %v295 = vpack.c.b16 %v277, %v275
  %v296 = vpack.c.b16 %v280, %v278
  %v297 = vpack.c.b16 %v281, %v279
  %314 = vmatprep.subr.bf16.mxu0 %v283
  %315 = vmatpush1.bf16.msra.mxu0 %v282
  %316 = vmatprep.subr.bf16.mxu0 %v285
  %317 = vmatpush1.bf16.msra.mxu0 %v284
  %318 = vmatprep.subr.bf16.mxu0 %v287
  %319 = vmatpush1.bf16.msra.mxu0 %v286
  %320 = vmatprep.subr.bf16.mxu0 %v289
  %321 = vmatpush1.bf16.msra.mxu0 %v288
  %322 = vmatprep.subr.bf16.mxu0 %v291
  %323 = vmatpush1.bf16.msra.mxu0 %v290
  %324 = vmatprep.subr.bf16.mxu0 %v293
  %325 = vmatpush1.bf16.msra.mxu0 %v292
  %326 = vmatprep.subr.bf16.mxu0 %v295
  %327 = vmatpush1.bf16.msra.mxu0 %v294
  %328 = vmatprep.subr.bf16.mxu0 %v297
  %329 = vmatpush1.bf16.msra.mxu0 %v296
  %330 = vmatprep.subr.bf16.mxu0 0
  %331 = vmatpush1.bf16.msra.mxu0 0
  %332 = vmatprep.subr.bf16.mxu0 0
  %333 = vmatpush1.bf16.msra.mxu0 0
  %334 = vmatprep.subr.bf16.mxu0 0
  %335 = vmatpush1.bf16.msra.mxu0 0
  %336 = vmatprep.subr.bf16.mxu0 0
  %337 = vmatpush1.bf16.msra.mxu0 0
  %338 = vmatprep.subr.bf16.mxu0 0
  %339 = vmatpush1.bf16.msra.mxu0 0
  %340 = vmatprep.subr.bf16.mxu0 0
  %341 = vmatpush1.bf16.msra.mxu0 0
  %342 = vmatprep.subr.bf16.mxu0 0
  %343 = vmatpush1.bf16.msra.mxu0 0
  %344 = vmatprep.subr.bf16.mxu0 0
  %345 = vmatpush1.bf16.msra.mxu0 0
  %346 = vmatprep.mubr.bf16.mxu0 0
  %347 = vmatmul.mubr.bf16.gmra.mrb[0].mxu0 %v205
  %v348 = vpop.f32.mrb[0].mxu0
  %v349 = vadd.f32 %v227, %v348
  %v350 = vpop.f32.mrb[0].mxu0
  %v351 = vadd.f32 %v231, %v350
  %v352 = vpop.f32.mrb[0].mxu0
  %v353 = vadd.f32 %v227, %v352
  %v354 = vpop.f32.mrb[0].mxu0
  %v355 = vadd.f32 %v231, %v354
  %356 = vdwg.mxu0
  %357 = vst [vmem:[%s7] sm:$0xff] %v349
  %358 = vst [vmem:[%s7 + $0x8] sm:$0xff] %v351
  %359 = vst [vmem:[%s7 + $0x10] sm:$0xff] %v353
  %360 = vst [vmem:[%s7 + $0x18] sm:$0xff] %v355
  // Predicated region
  $region30: #{combine_module_forward.1} parent=0 // pred_check
    _
  $region31: #{combine_module_forward.1} parent=0 // pred_check_branch
    %362 = sbr.rel (0) target = $region33
  $region32: #{combine_module_forward.1} parent=0 // pred_region
    _
  $region33: #{combine_module_forward.1} parent=0 // pred_fallthru
    _
  // Predicated region
  $region34: #{combine_module_forward.1} parent=0 // pred_check
    _
  $region35: #{combine_module_forward.1} parent=0 // pred_check_branch
    %364 = sbr.rel (0) target = $region37
  $region36: #{combine_module_forward.1} parent=0 // pred_region
    _
  $region37: #{combine_module_forward.1} parent=0 // pred_fallthru
    _

</llo_original>
